<compile_context>
chip_gen: v5e
topology: v5e:2x2
jax: 0.10.0
libtpu: 0.0.40
codegen_flags: <defaults>
</compile_context>

<pallas_src>
import jax
import jax.numpy as jnp
from jax.experimental import pallas as pl
from jax.experimental.pallas import tpu as pltpu

_LANES = 128


def _conv1d_kernel(x_ref, w_ref, b_ref, o_ref):
    """One batch-tile of the conv-as-GEMM.

    x_ref: (block_b, T + K - 1, C_in)  bf16 halo tile (per-batch zero padding
                                       already applied in the wrapper).
    w_ref: (K*C_in, C_pad)             bf16, columns >= C_out are zero.
    b_ref: (1, C_pad)                  f32.
    o_ref: (block_b, T, C_pad)         output dtype (f32), lane-dense.
    """
    block_b, t_out, _ = o_ref.shape
    c_in = x_ref.shape[-1]
    k_taps = w_ref.shape[0] // c_in

    # In-kernel im2col: K static shifted slices per batch row concatenated on
    # the lane axis, batches stacked on the row (sublane) axis.  Runs on
    # VPU/XLU slots next to the MXU; no K-times slab ever touches HBM.
    slab = jnp.concatenate(
        [jnp.concatenate([x_ref[j, s:s + t_out, :] for s in range(k_taps)],
                         axis=-1)
         for j in range(block_b)],
        axis=0)                                              # (block_b*T, K*C_in)

    # Single MXU push for the whole tile, f32 accumulation; bias added once in
    # the epilogue (hoisted out of any per-row work).
    acc = jnp.dot(slab, w_ref[...], preferred_element_type=jnp.float32)
    out = (acc + b_ref[...]).astype(o_ref.dtype)             # (block_b*T, C_pad)

    for j in range(block_b):
        o_ref[j, :, :] = out[j * t_out:(j + 1) * t_out, :]


def _pick_block_b(batch, t, target_rows=512):
    """Batches per grid step: aim for >= target_rows MXU rows; must divide B."""
    bb = max(1, min(batch, target_rows // max(t, 1)))
    if batch > 1:
        # keep at least two grid steps so the pipeline / parallel axis is real
        bb = max(1, min(bb, batch // 2))
    while batch % bb:
        bb -= 1
    return bb


def conv_layer_forward(x, weight, bias, kernel_size):
    """x: (B, T, C_in) f32; weight: (C_out, C_in, K) torch layout; bias: (C_out,)."""
    B, T, C_in = x.shape
    C_out, C_in_w, K = weight.shape
    assert C_in_w == C_in and K == kernel_size
    # ConstantPad1d((K-1)//2, 0) + valid Conv1d == same-length only for odd K.
    assert K % 2 == 1, "even kernel_size unsupported"  # TODO(synk): even-K asymmetric padding
    pad = (K - 1) // 2

    # Wrapper keeps only the tiny per-batch time padding and the bf16 cast;
    # everything else (im2col, GEMM, bias) happens inside the kernel.
    x_pad = jnp.pad(x, ((0, 0), (pad, pad), (0, 0))).astype(jnp.bfloat16)

    # (C_out, C_in, K) -> (K, C_in, C_out) -> (K*C_in, C_out); row s*C_in + ci
    # matches the in-kernel im2col lane order.  Zero-pad columns to 128 lanes
    # so output stores are lane-dense (extra MXU columns are free).
    c_pad = ((C_out + _LANES - 1) // _LANES) * _LANES
    w_mat = jnp.transpose(weight, (2, 1, 0)).reshape(K * C_in, C_out)
    w_mat = jnp.pad(w_mat, ((0, 0), (0, c_pad - C_out))).astype(jnp.bfloat16)
    b_row = jnp.pad(bias.reshape(1, C_out).astype(jnp.float32),
                    ((0, 0), (0, c_pad - C_out)))

    block_b = _pick_block_b(B, T)
    grid_b = B // block_b
    t_halo = T + 2 * pad

    out_padded = pl.pallas_call(
        _conv1d_kernel,
        out_shape=jax.ShapeDtypeStruct((B, T, c_pad), x.dtype),
        grid_spec=pltpu.PrefetchScalarGridSpec(
            num_scalar_prefetch=0,
            grid=(grid_b,),
            in_specs=[
                # Halo (padded-T) tile per batch block; weights/bias index_maps
                # are constant so they are loaded once and stay VMEM-resident.
                pl.BlockSpec((block_b, t_halo, C_in), lambda b: (b, 0, 0)),
                pl.BlockSpec((K * C_in, c_pad), lambda b: (0, 0)),
                pl.BlockSpec((1, c_pad), lambda b: (0, 0)),
            ],
            out_specs=pl.BlockSpec((block_b, T, c_pad), lambda b: (b, 0, 0)),
        ),
        compiler_params=pltpu.CompilerParams(
            dimension_semantics=("parallel",),    # megacore / dual-TC sharding
            vmem_limit_bytes=32 * 1024 * 1024,    # explicit scoped limit, safe on v5e/v6e/v7x
        ),
        cost_estimate=pl.CostEstimate(
            flops=2 * B * T * K * C_in * c_pad,
            transcendentals=0,
            bytes_accessed=(x_pad.size * 2 + w_mat.size * 2 + b_row.size * 4
                            + B * T * c_pad * 4),
        ),
    )(x_pad, w_mat, b_row)

    # TODO(synk): for very long sequences additionally tile the time axis with
    # halo blocks (pl.Element on T or manual make_async_copy), and group
    # features so K*C_in reaches an MXU edge (>=128) at production widths.
    return out_padded[:, :, :C_out]


if __name__ == "__main__":
    # Module config: n_features (= in = out channels), kernel_size=7.
    n_features = 4
    window_size = 16
    kernel_size = 7
    batch = 2

    key = jax.random.PRNGKey(0)
    kx, kw, kb = jax.random.split(key, 3)

    # Input as the PyTorch module expects it: (batch, window, n_features).
    x = jax.random.normal(kx, (batch, window_size, n_features), jnp.float32)

    # Deterministic Conv1d-style init (uniform in +/- 1/sqrt(fan_in)).
    fan_in = n_features * kernel_size
    bound = 1.0 / (fan_in ** 0.5)
    weight = jax.random.uniform(
        kw, (n_features, n_features, kernel_size), jnp.float32, -bound, bound)
    bias = jax.random.uniform(kb, (n_features,), jnp.float32, -bound, bound)

    out = conv_layer_forward(x, weight, bias, kernel_size)
    out = jax.block_until_ready(out)

    # Pure-JAX reference using the same bf16 rounding of x/W that the MXU sees
    # (accumulation stays f32), so the tolerance can stay tight.
    pad = (kernel_size - 1) // 2
    x_bf = x.astype(jnp.bfloat16).astype(jnp.float32)
    w_bf = weight.astype(jnp.bfloat16).astype(jnp.float32)
    x_pad_ref = jnp.pad(x_bf, ((0, 0), (pad, pad), (0, 0)))
    ref = jnp.zeros((batch, window_size, n_features), jnp.float32)
    for k in range(kernel_size):
        ref = ref + jnp.einsum(
            "btc,oc->bto", x_pad_ref[:, k:k + window_size, :], w_bf[:, :, k])
    ref = ref + bias[None, None, :]

    assert out.shape == (batch, window_size, n_features)
    assert out.dtype == x.dtype
    assert jnp.allclose(out, ref, atol=1e-4, rtol=1e-4)

    # NOTE: the PyTorch forward() defines self.relu but never applies it, so no
    # ReLU is applied here either (exact semantics match).
    print("KERNEL_OK")
</pallas_src>

<mosaic_0001>
module attributes {stable_mosaic.version = 11 : i64} {
  func.func @_conv1d_kernel(%arg0: i32, %arg1: memref<1x22x4xbf16, #tpu.memory_space<vmem>>, %arg2: memref<28x128xbf16, #tpu.memory_space<vmem>>, %arg3: memref<1x128xf32, #tpu.memory_space<vmem>>, %arg4: memref<1x16x128xf32, #tpu.memory_space<vmem>>) attributes {dimension_semantics = [#tpu.dimension_semantics<parallel>], iteration_bounds = array<i64: 2>, scalar_prefetch = 0 : i64, scratch_operands = 0 : i64, tpu.core_type = #tpu.core_type<tc>, window_params = [{transform_indices = @transform_0, window_bounds = array<i64: 1, 22, 4>}, {pipeline_mode = #tpu.pipeline_mode<synchronous>, transform_indices = @transform_1, window_bounds = array<i64: 28, 128>}, {pipeline_mode = #tpu.pipeline_mode<synchronous>, transform_indices = @transform_2, window_bounds = array<i64: 1, 128>}, {transform_indices = @transform_3, window_bounds = array<i64: 1, 16, 128>}]} {
    %c0 = arith.constant 0 : index
    %c0_0 = arith.constant 0 : index
    %c0_1 = arith.constant 0 : index
    %0 = vector.load %arg1[%c0, %c0_0, %c0_1] : memref<1x22x4xbf16, #tpu.memory_space<vmem>>, vector<1x16x4xbf16>
    %1 = vector.shape_cast %0 : vector<1x16x4xbf16> to vector<16x4xbf16>
    %c0_2 = arith.constant 0 : index
    %c1 = arith.constant 1 : index
    %c0_3 = arith.constant 0 : index
    %2 = vector.load %arg1[%c0_2, %c1, %c0_3] : memref<1x22x4xbf16, #tpu.memory_space<vmem>>, vector<1x16x4xbf16>
    %3 = vector.shape_cast %2 : vector<1x16x4xbf16> to vector<16x4xbf16>
    %c0_4 = arith.constant 0 : index
    %c2 = arith.constant 2 : index
    %c0_5 = arith.constant 0 : index
    %4 = vector.load %arg1[%c0_4, %c2, %c0_5] : memref<1x22x4xbf16, #tpu.memory_space<vmem>>, vector<1x16x4xbf16>
    %5 = vector.shape_cast %4 : vector<1x16x4xbf16> to vector<16x4xbf16>
    %c0_6 = arith.constant 0 : index
    %c3 = arith.constant 3 : index
    %c0_7 = arith.constant 0 : index
    %6 = vector.load %arg1[%c0_6, %c3, %c0_7] : memref<1x22x4xbf16, #tpu.memory_space<vmem>>, vector<1x16x4xbf16>
    %7 = vector.shape_cast %6 : vector<1x16x4xbf16> to vector<16x4xbf16>
    %c0_8 = arith.constant 0 : index
    %c4 = arith.constant 4 : index
    %c0_9 = arith.constant 0 : index
    %8 = vector.load %arg1[%c0_8, %c4, %c0_9] : memref<1x22x4xbf16, #tpu.memory_space<vmem>>, vector<1x16x4xbf16>
    %9 = vector.shape_cast %8 : vector<1x16x4xbf16> to vector<16x4xbf16>
    %c0_10 = arith.constant 0 : index
    %c5 = arith.constant 5 : index
    %c0_11 = arith.constant 0 : index
    %10 = vector.load %arg1[%c0_10, %c5, %c0_11] : memref<1x22x4xbf16, #tpu.memory_space<vmem>>, vector<1x16x4xbf16>
    %11 = vector.shape_cast %10 : vector<1x16x4xbf16> to vector<16x4xbf16>
    %c0_12 = arith.constant 0 : index
    %c6 = arith.constant 6 : index
    %c0_13 = arith.constant 0 : index
    %12 = vector.load %arg1[%c0_12, %c6, %c0_13] : memref<1x22x4xbf16, #tpu.memory_space<vmem>>, vector<1x16x4xbf16>
    %13 = vector.shape_cast %12 : vector<1x16x4xbf16> to vector<16x4xbf16>
    %14 = tpu.concatenate %1, %3, %5, %7, %9, %11, %13 in 1 : vector<16x4xbf16>, vector<16x4xbf16>, vector<16x4xbf16>, vector<16x4xbf16>, vector<16x4xbf16>, vector<16x4xbf16>, vector<16x4xbf16> -> vector<16x28xbf16>
    %c0_14 = arith.constant 0 : index
    %c0_15 = arith.constant 0 : index
    %15 = vector.load %arg2[%c0_14, %c0_15] : memref<28x128xbf16, #tpu.memory_space<vmem>>, vector<28x128xbf16>
    %cst = arith.constant dense<0.000000e+00> : vector<16x128xf32>
    %16 = tpu.matmul %14, %15, %cst {dimension_numbers = #tpu.dot_dimension_numbers<[1], [0], [0], [1], [0, 0, 1, 1], [], []>} : vector<16x28xbf16>, vector<28x128xbf16>, vector<16x128xf32> -> vector<16x128xf32>
    %c0_16 = arith.constant 0 : index
    %c0_17 = arith.constant 0 : index
    %17 = vector.load %arg3[%c0_16, %c0_17] : memref<1x128xf32, #tpu.memory_space<vmem>>, vector<1x128xf32>
    %18 = vector.broadcast %17 : vector<1x128xf32> to vector<16x128xf32>
    %19 = arith.addf %16, %18 : vector<16x128xf32>
    %c0_18 = arith.constant 0 : index
    %c0_19 = arith.constant 0 : index
    %c0_20 = arith.constant 0 : index
    %20 = vector.load %arg4[%c0_18, %c0_19, %c0_20] : memref<1x16x128xf32, #tpu.memory_space<vmem>>, vector<1x16x128xf32>
    %21 = vector.shape_cast %20 : vector<1x16x128xf32> to vector<16x128xf32>
    %22 = vector.shape_cast %19 : vector<16x128xf32> to vector<1x16x128xf32>
    tpu.vector_store %arg4[%c0_18, %c0_19, %c0_20], %22 {strides = array<i32>} : memref<1x16x128xf32, #tpu.memory_space<vmem>>, vector<1x16x128xf32>,
    return
  }
  func.func @transform_0(%arg0: i32) -> (i32, i32, i32) {
    %c0_i32 = arith.constant 0 : i32
    %c0_i32_0 = arith.constant 0 : i32
    %c0_i32_1 = arith.constant 0 : i32
    return %arg0, %c0_i32, %c0_i32_0 : i32, i32, i32
  }
  func.func @transform_1(%arg0: i32) -> (i32, i32) {
    %c0_i32 = arith.constant 0 : i32
    %c0_i32_0 = arith.constant 0 : i32
    %c0_i32_1 = arith.constant 0 : i32
    return %c0_i32, %c0_i32_0 : i32, i32
  }
  func.func @transform_2(%arg0: i32) -> (i32, i32) {
    %c0_i32 = arith.constant 0 : i32
    %c0_i32_0 = arith.constant 0 : i32
    %c0_i32_1 = arith.constant 0 : i32
    return %c0_i32, %c0_i32_0 : i32, i32
  }
  func.func @transform_3(%arg0: i32) -> (i32, i32, i32) {
    %c0_i32 = arith.constant 0 : i32
    %c0_i32_0 = arith.constant 0 : i32
    %c0_i32_1 = arith.constant 0 : i32
    return %arg0, %c0_i32, %c0_i32_0 : i32, i32, i32
  }
}

</mosaic_0001>

<llo_original>
// kernel: tpu_custom_call.1
$region0: #{tpu_custom_call.1}
  #allocation0 [shape = 'u32[]', space=smem, size = 0x4, offset = 0x4, fixed_abs, tag = 'smem constant byte address 0x4 - core index']
  #allocation1 [shape = 'u32[72,128]{1,0:T(1,128)}', space=vmem, size = 0x9000, scoped, tag = 'internal scratch']
  %s0 = inlined_call_operand.vmem [shape: bf16[2,22,4], index: 0, kind: input, shape index: {}]
  %s1 = inlined_call_operand.vmem [shape: bf16[28,128], index: 1, kind: input, shape index: {}]
  %s2 = inlined_call_operand.vmem [shape: f32[1,128], index: 2, kind: input, shape index: {}]
  %s3 = inlined_call_operand.hbm [shape: f32[2,16,128], index: 3, kind: output, shape index: {}]
  %s4 = sld [smem:[#allocation0]]
  $region45: #{tpu_custom_call.1} parent=0
    _
  %s6 = ssub.s32 1, %s4
  %s7 = scalar_select 0, %s6, %s4
  $region1: #{tpu_custom_call.1} parent=0
    #allocation2 [shape = 'u8[16384]{0}', space=vmem, size = 0x4000, scoped, tag = 'output window, operand 0']
    #allocation3 [shape = 's32[2]{0}', space=sflag, size = 0x8, scoped, tag = 'scoped memory for tpu_custom_call.1']
    %8 = vsyncpa [#allocation3], 0
    %s9 = scalar_lea.sflag [#allocation3], 1
    %10 = vsyncpa %s9, 0
    loop: start=0, step=1, limit=4
    $region2: #{tpu_custom_call.1} parent=1 // loop_pre_header
      _
    $region3: #{tpu_custom_call.1} parent=1 // loop_header
      %s12 = sphi 0, %s16
      %p13 = scmp.ge.s32.totalorder %s12, 4
      %s22 = sphi 0, %s24
      %s25 = sphi 0, %s22
      %s26 = sphi 0, %s25
      %s42 = sphi 0, %s26
      %s46 = sphi 0, %s46
      %s48 = sphi 0, %s46
      %s49 = sphi 0, %s48
      %s63 = sphi 0, %s49
      %s67 = sphi 0, %s67
      %s69 = sphi 0, %s67
      %s70 = sphi 0, %s69
      %s84 = sphi 0, %s70
      %s90 = sphi 0, %s92
      %s93 = sphi 0, %s90
      %s94 = sphi 0, %s93
      %s110 = sphi 0, %s94
    $region4: #{tpu_custom_call.1} parent=1 // loop_header_branch
      %15 = sbr.rel (%p13) target = $region8
    $region5: #{tpu_custom_call.1} parent=1 // loop_body
      %s17 = ssub.s32 %s12, 1
      %s18 = ssub.s32 %s12, 2
      %s19 = sadd.s32 %s12, 1
      %s20 = ssub.s32 %s12, %s19
      %p21 = scmp.eq.s32.totalorder %s20, 0
      %s23 = sadd.s32 %s22, 1
      %s24 = scalar_select %p21, %s22, %s23
      %p27 = pneg %p21
      %p28 = scmp.eq.s32.totalorder %s12, 1
      %p29 = por %p27, %p28
      %p30 = scmp.ne.s32.totalorder %s22, %s25
      %p31 = scmp.eq.s32.totalorder %s12, 0
      %p32 = por %p30, %p31
      %p33 = scmp.ne.s32.totalorder %s22, %s25
      %p34 = scmp.eq.s32.totalorder %s17, 1
      %p35 = por %p33, %p34
      %p36 = scmp.ne.s32.totalorder %s25, %s26
      %p37 = scmp.eq.s32.totalorder %s17, 0
      %p38 = por %p36, %p37
      %p39 = scmp.ne.s32.totalorder %s25, %s26
      %p40 = scmp.eq.s32.totalorder %s18, 1
      %p41 = por %p39, %p40
      %p43 = scmp.ne.s32.totalorder %s26, %s42
      %p44 = scmp.eq.s32.totalorder %s18, 0
      %p45 = por %p43, %p44
      %s47 = sadd.s32 %s46, 1
      %p50 = scmp.eq.s32.totalorder %s12, 1
      %p51 = scmp.ne.s32.totalorder %s46, %s48
      %p52 = scmp.eq.s32.totalorder %s12, 0
      %p53 = por %p51, %p52
      %p54 = scmp.ne.s32.totalorder %s46, %s48
      %p55 = scmp.eq.s32.totalorder %s17, 1
      %p56 = por %p54, %p55
      %p57 = scmp.ne.s32.totalorder %s48, %s49
      %p58 = scmp.eq.s32.totalorder %s17, 0
      %p59 = por %p57, %p58
      %p60 = scmp.ne.s32.totalorder %s48, %s49
      %p61 = scmp.eq.s32.totalorder %s18, 1
      %p62 = por %p60, %p61
      %p64 = scmp.ne.s32.totalorder %s49, %s63
      %p65 = scmp.eq.s32.totalorder %s18, 0
      %p66 = por %p64, %p65
      %s68 = sadd.s32 %s67, 1
      %p71 = scmp.eq.s32.totalorder %s12, 1
      %p72 = scmp.ne.s32.totalorder %s67, %s69
      %p73 = scmp.eq.s32.totalorder %s12, 0
      %p74 = por %p72, %p73
      %p75 = scmp.ne.s32.totalorder %s67, %s69
      %p76 = scmp.eq.s32.totalorder %s17, 1
      %p77 = por %p75, %p76
      %p78 = scmp.ne.s32.totalorder %s69, %s70
      %p79 = scmp.eq.s32.totalorder %s17, 0
      %p80 = por %p78, %p79
      %p81 = scmp.ne.s32.totalorder %s69, %s70
      %p82 = scmp.eq.s32.totalorder %s18, 1
      %p83 = por %p81, %p82
      %p85 = scmp.ne.s32.totalorder %s70, %s84
      %p86 = scmp.eq.s32.totalorder %s18, 0
      %p87 = por %p85, %p86
      %s88 = ssub.s32 %s12, %s19
      %p89 = scmp.eq.s32.totalorder %s88, 0
      %s91 = sadd.s32 %s90, 1
      %s92 = scalar_select %p89, %s90, %s91
      %p95 = pneg %p89
      %p96 = scmp.eq.s32.totalorder %s12, 1
      %p97 = por %p95, %p96
      %p98 = scmp.ne.s32.totalorder %s90, %s93
      %p99 = scmp.eq.s32.totalorder %s12, 0
      %p100 = por %p98, %p99
      %p101 = scmp.ne.s32.totalorder %s90, %s93
      %p102 = scmp.eq.s32.totalorder %s17, 1
      %p103 = por %p101, %p102
      %p104 = scmp.ne.s32.totalorder %s93, %s94
      %p105 = scmp.eq.s32.totalorder %s17, 0
      %p106 = por %p104, %p105
      %p107 = scmp.ne.s32.totalorder %s93, %s94
      %p108 = scmp.eq.s32.totalorder %s18, 1
      %p109 = por %p107, %p108
      %p111 = scmp.ne.s32.totalorder %s94, %s110
      %p112 = scmp.eq.s32.totalorder %s18, 0
      %p113 = por %p111, %p112
      %p114 = scmp.le.s32.totalorder 1, %s12
      %p115 = scmp.lt.s32.totalorder %s12, 3
      %p116 = pnand %p114, %p115
      %p117 = pneg %p116
      // Predicated region
      $region9: #{tpu_custom_call.1} parent=5 // pred_check
        _
      $region10: #{tpu_custom_call.1} parent=5 // pred_check_branch
        %119 = sbr.rel (%p116) target = $region12
      $region11: #{tpu_custom_call.1} parent=5 // pred_region
        %s120 = ssub.s32 %s12, 1
        // Predicated region
        $region13: #{tpu_custom_call.1} parent=11 // pred_check
          %p121 = pneg %p59
        $region14: #{tpu_custom_call.1} parent=11 // pred_check_branch
          %123 = sbr.rel (%p121) target = $region16
        $region15: #{tpu_custom_call.1} parent=11 // pred_region
          _
        $region16: #{tpu_custom_call.1} parent=11 // pred_fallthru
          _
        // Predicated region
        $region17: #{tpu_custom_call.1} parent=11 // pred_check
          %p124 = pneg %p80
        $region18: #{tpu_custom_call.1} parent=11 // pred_check_branch
          %126 = sbr.rel (%p124) target = $region20
        $region19: #{tpu_custom_call.1} parent=11 // pred_region
          _
        $region20: #{tpu_custom_call.1} parent=11 // pred_fallthru
          _
      $region12: #{tpu_custom_call.1} parent=5 // pred_fallthru
        _
      %p127 = scmp.lt.s32.totalorder %s12, 2
      // Predicated region
      $region21: #{tpu_custom_call.1} parent=5 // pred_check
        %p128 = pneg %p127
      $region22: #{tpu_custom_call.1} parent=5 // pred_check_branch
        %130 = sbr.rel (%p128) target = $region24
      $region23: #{tpu_custom_call.1} parent=5 // pred_region
        // Predicated region
        $region25: #{tpu_custom_call.1} parent=23 // pred_check
          %p131 = pneg %p32
        $region26: #{tpu_custom_call.1} parent=23 // pred_check_branch
          %133 = sbr.rel (%p131) target = $region28
        $region27: #{tpu_custom_call.1} parent=23 // pred_region
          %p134 = scmp.lt.s32.totalorder %s12, 1
          %s135 = scalar_select %p134, %s12, 1
          %s136 = smul.addr %s135, 3
          %s137 = smul.addr %s136, 4
          %s138 = scalar_lea.vmem %s0, %s137
        $region28: #{tpu_custom_call.1} parent=23 // pred_fallthru
          _
      $region24: #{tpu_custom_call.1} parent=5 // pred_fallthru
        _
      %p139 = scmp.le.s32.totalorder 1, %s12
      %p140 = scmp.lt.s32.totalorder %s12, 3
      %p141 = pnand %p139, %p140
      %p142 = pneg %p141
      // Predicated region
      $region29: #{tpu_custom_call.1} parent=5 // pred_check
        _
      $region30: #{tpu_custom_call.1} parent=5 // pred_check_branch
        %144 = sbr.rel (%p141) target = $region32
      $region31: #{tpu_custom_call.1} parent=5 // pred_region
        %s145 = ssub.s32 %s12, 1
        %p146 = scmp.lt.s32.totalorder %s17, 1
        %s147 = scalar_select %p146, %s17, 1
        %s148 = smul.addr %s147, 3
        %s149 = smul.addr %s148, 4
        %s150 = scalar_lea.vmem %s0, %s149
        %p151 = pneg %p38
        %p152 = pneg %p35
        %p153 = pneg %p59
        %p154 = pneg %p56
        %p155 = pneg %p80
        %p156 = pneg %p77
        %p157 = pneg %p106
        %p158 = pneg %p103
        %s159 = sand.u32 %s93, 1
        %s160 = scalar_lea.sflag [#allocation3], %s159
        %s161 = sand.u32 %s93, 1
        %s162 = smul.addr %s161, 16
        %s163 = scalar_lea.vmem [#allocation2], %s162
        %p164 = scmp.lt.s32.totalorder %s17, 1
        %s165 = scalar_select %p164, %s17, 1
        %s166 = smul.addr %s165, 3
        %s167 = smul.addr %s166, 4
        %s168 = scalar_lea.vmem %s0, %s167
        %v170 = vld [vmem:[%s168] sm:$0xf]
        %v171 = vld [vmem:[%s168 + $0x4] sm:$0xf]
        %v172 = vld [vmem:[%s168 + $0x8] sm:$0x1]
        %v173 = vld [vmem:[%s168] sm:$0xe]
        %v174 = vld [vmem:[%s168 + $0x8] sm:$0x3]
        %v175 = vld [vmem:[%s168] sm:$0xc]
        %v176 = vld [vmem:[%s168 + $0x8] sm:$0x7]
        %v177 = vld [vmem:[%s168] sm:$0x8]
        %v180 = vunpack.c.l.b16 %v170
        %v181 = vunpack.c.l.b16 %v171
        %v182 = vpack.c.b16 %v181, %v180
        %v184 = vunpack.c.l.b16 %v172
        %v185 = vpack.c.b16 %v184, %v184
        %vm186 = vsmask.f32 7424
        %v188 = vshrl.u32 %v182, 16
        %v190 = vshll.u32 %v182, 16
        %v192 = vrot.slane %v190, 1
        %v193 = vor.u32 %v188, %v192
        %v195 = vshll.u32 %v185, 16
        %v197 = vrot.slane %v195, 1
        %v198 = vsel %vm186, %v193, %v197
        %199 = vrot.lane.b32.xlu0 %v198, 4
        %v200 = vpop.permute.xlu0 %199
        %v202 = vunpack.c.l.b16 %v173
        %v203 = vpack.c.b16 %v181, %v202
        %vm204 = vcmask 1046528
        %v205 = vrot.slane %v203, 1
        %v206 = vrot.slane %v185, 1
        %v207 = vsel %vm204, %v205, %v206
        %208 = vrot.lane.b32.xlu0 %v207, 8
        %v209 = vpop.permute.xlu0 %208
        %v211 = vunpack.c.l.b16 %v174
        %v212 = vpack.c.b16 %v211, %v211
        %vm213 = vsmask.f32 6400
        %v215 = vshrl.u32 %v203, 16
        %v217 = vrot.slane %v215, 1
        %v218 = vshll.u32 %v203, 16
        %v220 = vrot.slane %v218, 2
        %v221 = vor.u32 %v217, %v220
        %v223 = vshrl.u32 %v212, 16
        %v225 = vrot.slane %v223, 1
        %v226 = vshll.u32 %v212, 16
        %v228 = vrot.slane %v226, 2
        %v229 = vor.u32 %v225, %v228
        %v230 = vsel %vm213, %v221, %v229
        %231 = vrot.lane.b32.xlu0 %v230, 12
        %v232 = vpop.permute.xlu0 %231
        %v234 = vunpack.c.l.b16 %v175
        %v235 = vpack.c.b16 %v181, %v234
        %vm236 = vcmask 1045504
        %v237 = vrot.slane %v235, 2
        %v238 = vrot.slane %v212, 2
        %v239 = vsel %vm236, %v237, %v238
        %240 = vrot.lane.b32.xlu0 %v239, 16
        %v241 = vpop.permute.xlu0 %240
        %v243 = vunpack.c.l.b16 %v176
        %v244 = vpack.c.b16 %v243, %v243
        %vm245 = vsmask.f32 5376
        %v247 = vshrl.u32 %v235, 16
        %v249 = vrot.slane %v247, 2
        %v250 = vshll.u32 %v235, 16
        %v252 = vrot.slane %v250, 3
        %v253 = vor.u32 %v249, %v252
        %v255 = vshrl.u32 %v244, 16
        %v257 = vrot.slane %v255, 2
        %v258 = vshll.u32 %v244, 16
        %v260 = vrot.slane %v258, 3
        %v261 = vor.u32 %v257, %v260
        %v262 = vsel %vm245, %v253, %v261
        %263 = vrot.lane.b32.xlu0 %v262, 20
        %v264 = vpop.permute.xlu0 %263
        %v266 = vunpack.c.l.b16 %v177
        %v267 = vpack.c.b16 %v181, %v266
        %vm268 = vcmask 1044480
        %v269 = vrot.slane %v267, 3
        %v270 = vrot.slane %v244, 3
        %v271 = vsel %vm268, %v269, %v270
        %272 = vrot.lane.b32.xlu0 %v271, 24
        %v273 = vpop.permute.xlu0 %272
        %vm274 = vcmask 31744
        %v276 = vsel %vm274, %v182, %v200
        %vm277 = vcmask 64512
        %v279 = vsel %vm277, %v276, %v209
        %vm280 = vcmask 97280
        %v282 = vsel %vm280, %v279, %v232
        %vm283 = vcmask 130048
        %v285 = vsel %vm283, %v282, %v241
        %vm286 = vcmask 162816
        %v288 = vsel %vm286, %v285, %v264
        %vm289 = vcmask 195584
        %v291 = vsel %vm289, %v288, %v273
        %v292 = vld [vmem:[%s1] sm:$0xf]
        %v293 = vld [vmem:[%s1 + $0x4] sm:$0xf]
        %v294 = vld [vmem:[%s1 + $0x8] sm:$0xf]
        %v295 = vld [vmem:[%s1 + $0xc] sm:$0x3]
        %v296 = vld [vmem:[%s2] sm:$0x1]
        %v298 = vperm.slane %v296, 0
        %v304 = vunpack.c.l.b16 %v292
        %v305 = vunpack.c.l.b16 %v293
        %v306 = vunpack.c.l.b16 %v294
        %v307 = vunpack.c.l.b16 %v295
        %v308 = vpack.c.b16 %v305, %v304
        %v309 = vpack.c.b16 %v307, %v306
        %vm311 = vcmask 228352
        %v312 = vsel %vm311, %v291, 0
        %vm314 = vcmask 1045504
        %v316 = vsel %vm314, %v309, 0
        %318 = vmatpush.bf16.msra.mxu0 0
        %319 = vmatpush.bf16.msra.mxu0 0
        %320 = vmatpush.bf16.msra.mxu0 0
        %321 = vmatpush.bf16.msra.mxu0 0
        %322 = vmatpush.bf16.msra.mxu0 0
        %323 = vmatpush.bf16.msra.mxu0 0
        %324 = vmatpush.bf16.msra.mxu0 %v316
        %325 = vmatpush.bf16.msra.mxu0 %v308
        %326 = vmatmul.bf16.gmra.mxu0 %v312
        %v327 = vpop.f32.mrf.mxu0
        %v328 = vadd.f32 %v298, %v327
        %v329 = vpop.f32.mrf.mxu0
        %v330 = vadd.f32 %v298, %v329
        %331 = vdwg.mxu0
        %332 = vst [vmem:[%s163] sm:$0xff] %v328
        %333 = vst [vmem:[%s163 + $0x8] sm:$0xff] %v330
        %s334 = sand.u32 %s93, 1
        %s335 = scalar_lea.sflag [#allocation3], %s334
        %s336 = sand.u32 %s93, 1
        %s337 = smul.addr %s336, 16
        %s338 = scalar_lea.vmem [#allocation2], %s337
        // Predicated region
        $region33: #{tpu_custom_call.1} parent=31 // pred_check
          %p339 = pneg %p103
        $region34: #{tpu_custom_call.1} parent=31 // pred_check_branch
          %341 = sbr.rel (%p339) target = $region36
        $region35: #{tpu_custom_call.1} parent=31 // pred_region
          %343 = vsyncadd %s335, 0
          %s344 = smul.addr %s17, 2
          %s345 = smul.addr %s344, 8
          %s346 = scalar_lea.hbm %s3, %s345
          %s347 = sshll.u32 %s338, 4
          %s348 = int_to_ptr.vmem [resolvable:$true] %s347
          %s349 = sshll.u32 %s346, 4
          %s350 = int_to_ptr.hbm [resolvable:$true] %s349
          %355 = dma.vmem_to_hbm [thread:$0]  %s348, 256, %s350, %s335, 128, 128, 8
        $region36: #{tpu_custom_call.1} parent=31 // pred_fallthru
          _
      $region32: #{tpu_custom_call.1} parent=5 // pred_fallthru
        _
      %p356 = scmp.le.s32.totalorder 2, %s12
      // Predicated region
      $region37: #{tpu_custom_call.1} parent=5 // pred_check
        %p357 = pneg %p356
      $region38: #{tpu_custom_call.1} parent=5 // pred_check_branch
        %359 = sbr.rel (%p357) target = $region40
      $region39: #{tpu_custom_call.1} parent=5 // pred_region
        %s360 = ssub.s32 %s12, 2
        // Predicated region
        $region41: #{tpu_custom_call.1} parent=39 // pred_check
          %p361 = pneg %p109
        $region42: #{tpu_custom_call.1} parent=39 // pred_check_branch
          %363 = sbr.rel (%p361) target = $region44
        $region43: #{tpu_custom_call.1} parent=39 // pred_region
          %s364 = sand.u32 %s94, 1
          %s365 = scalar_lea.sflag [#allocation3], %s364
          %s366 = sand.u32 %s94, 1
          %s367 = smul.addr %s366, 16
          %s368 = scalar_lea.vmem [#allocation2], %s367
          %370 = dma.done %s365, 256
        $region44: #{tpu_custom_call.1} parent=39 // pred_fallthru
          _
      $region40: #{tpu_custom_call.1} parent=5 // pred_fallthru
        _
    $region6: #{tpu_custom_call.1} parent=1 // loop_footer
      %s16 = sadd.s32 1, %s12
    $region7: #{tpu_custom_call.1} parent=1 // loop_footer_branch
      %11 = sbr.rel target = $region3
    $region8: #{tpu_custom_call.1} parent=1 // loop_exit
      _
    %371 = vsyncpa [#allocation3], 1
    %s372 = scalar_lea.sflag [#allocation3], 1
    %373 = vsyncpa %s372, 1

</llo_original>
